<compile_context>
chip_gen: v5e
topology: v5e:2x2
jax: 0.10.0
libtpu: 0.0.40
codegen_flags: <defaults>
</compile_context>

<pallas_src>
import functools
import math

import jax
import jax.numpy as jnp
from jax.experimental import pallas as pl
from jax.experimental.pallas import tpu as pltpu


# --------------------------------------------------------------------------- #
# Kernel
# --------------------------------------------------------------------------- #
def _taylor_softmax_kernel(x_ref, o_ref, *, coeffs):
    # x_ref block: (tile_b, C); compute in f32 regardless of input dtype.
    x = x_ref[...].astype(jnp.float32)

    # fn = 1 + sum_{i=1..t} x^i / i!, evaluated in Horner form.
    # coeffs = (1/t!, 1/(t-1)!, ..., 1/1!, 1/0!) as compile-time constants.
    fn = jnp.full_like(x, coeffs[0])
    for c in coeffs[1:]:
        fn = fn * x + c

    # Row-wise normalization over the class (lane) axis.
    denom = jnp.sum(fn, axis=-1, keepdims=True)     # (tile_b, 1)
    inv = 1.0 / denom                               # exact divide on tiny tensor
    o_ref[...] = (fn * inv).astype(o_ref.dtype)


# --------------------------------------------------------------------------- #
# Tile-size / VMEM heuristics
# --------------------------------------------------------------------------- #
def _round_up(n: int, m: int) -> int:
    return ((n + m - 1) // m) * m


def _sublane_multiple(dtype) -> int:
    # f32 -> 8, bf16 -> 16, int8/fp8 -> 32 (packed sublanes).
    return {4: 8, 2: 16, 1: 32}.get(jnp.dtype(dtype).itemsize, 8)


def _vmem_capacity_bytes() -> int:
    try:
        return int(pltpu.get_tpu_info().vmem_capacity_bytes)
    except Exception:
        return 64 << 20  # conservative fallback = v7x per-TensorCore VMEM


def _choose_tile_b(B: int, C: int, dtype) -> int:
    sub = _sublane_multiple(dtype)
    if B <= sub:
        # Full-extent block along batch is always a legal block shape.
        return B

    itemsize = jnp.dtype(dtype).itemsize
    # Per-row VMEM footprint: double-buffered input + output tiles plus ~2 f32
    # temporaries inside the kernel body.
    bytes_per_row = C * (4 * itemsize + 2 * 4)
    budget = _vmem_capacity_bytes() // 4            # leave ample headroom
    max_rows = max(sub, budget // max(bytes_per_row, 1))

    tile_b = min(2048, max_rows)
    # Keep at least 2 grid steps so both v7x TensorCores get work.
    tile_b = min(tile_b, _round_up(pl.cdiv(B, 2), sub))
    tile_b = max(sub, (tile_b // sub) * sub)
    return tile_b


# --------------------------------------------------------------------------- #
# Wrapper
# --------------------------------------------------------------------------- #
def _taylor_softmax_2d(x: jax.Array, *, t: int, tile_b: int | None) -> jax.Array:
    B, C = x.shape
    if tile_b is None:
        tile_b = _choose_tile_b(B, C, x.dtype)

    # Compile-time Taylor coefficients 1/i! in Horner order (highest power first).
    coeffs = tuple(1.0 / math.factorial(i) for i in range(t, -1, -1))
    kernel = functools.partial(_taylor_softmax_kernel, coeffs=coeffs)

    # VMEM budget: double-buffered input + output tiles, plus f32 temporaries.
    itemsize = jnp.dtype(x.dtype).itemsize
    block_bytes = tile_b * C * itemsize
    vmem_need = 4 * block_bytes + 2 * tile_b * C * 4 + (2 << 20)
    vmem_limit = int(min(max(vmem_need, 16 << 20), _vmem_capacity_bytes() // 2))

    grid = (pl.cdiv(B, tile_b),)  # ragged last block handled by Pallas

    return pl.pallas_call(
        kernel,
        out_shape=jax.ShapeDtypeStruct((B, C), x.dtype),
        grid=grid,
        in_specs=[pl.BlockSpec((tile_b, C), lambda i: (i, 0))],
        out_specs=pl.BlockSpec((tile_b, C), lambda i: (i, 0)),
        compiler_params=pltpu.CompilerParams(
            dimension_semantics=("parallel",),
            vmem_limit_bytes=vmem_limit,
        ),
    )(x)


def taylor_softmax(x: jax.Array, *, dim: int = 1, t: int = 2,
                   tile_b: int | None = None) -> jax.Array:
    """TaylorSoftmax over axis `dim` of x (x.ndim >= 2), matching the PyTorch module."""
    assert t % 2 == 0, "t must be even"
    assert x.ndim >= 2, "Please provide at least one logit per class"
    dim = dim % x.ndim

    if x.ndim == 2 and dim == 1:
        return _taylor_softmax_2d(x, t=t, tile_b=tile_b)

    # Move the class axis last (lane-dense) and flatten the rest into a batch.
    orig_shape = x.shape
    C = orig_shape[dim]
    moved_shape = tuple(s for i, s in enumerate(orig_shape) if i != dim) + (C,)
    x2 = jnp.moveaxis(x, dim, -1).reshape(-1, C)
    out2 = _taylor_softmax_2d(x2, t=t, tile_b=tile_b)
    return jnp.moveaxis(out2.reshape(moved_shape), -1, dim)


def taylor_softmax_ref(x: jax.Array, *, dim: int = 1, t: int = 2) -> jax.Array:
    """Pure-JAX reference mirroring the PyTorch forward exactly."""
    x32 = x.astype(jnp.float32)
    fn = jnp.ones_like(x32)
    denor = 1.0
    for i in range(1, t + 1):
        denor *= float(i)
        fn = fn + jnp.power(x32, i) / denor
    out = fn / jnp.sum(fn, axis=dim, keepdims=True)
    return out.astype(x.dtype)


if __name__ == "__main__":
    key = jax.random.PRNGKey(0)

    # Case 1: small logit matrix (batch, num_classes), reduce over dim=1.
    B, C = 16, 128
    x = jax.random.normal(key, (B, C), dtype=jnp.float32)
    out = jax.block_until_ready(taylor_softmax(x, t=2))
    ref = taylor_softmax_ref(x, t=2)
    assert out.shape == ref.shape and out.dtype == ref.dtype
    assert jnp.allclose(out, ref, atol=1e-5, rtol=1e-4), "mismatch vs reference (case 1)"
    assert jnp.allclose(jnp.sum(out, axis=1), jnp.ones((B,)), atol=1e-4)

    # Case 2: ragged batch (not divisible by the tile) and non-128 class count.
    B2, C2 = 20, 100
    x2 = jax.random.normal(jax.random.PRNGKey(1), (B2, C2), dtype=jnp.float32)
    out2 = jax.block_until_ready(taylor_softmax(x2, t=2))
    ref2 = taylor_softmax_ref(x2, t=2)
    assert jnp.allclose(out2, ref2, atol=1e-5, rtol=1e-4), "mismatch vs reference (case 2)"
    assert jnp.allclose(jnp.sum(out2, axis=1), jnp.ones((B2,)), atol=1e-4)

    # Case 3: rank-3 input with the module's default dim=1 (class axis not last).
    x3 = jax.random.normal(jax.random.PRNGKey(2), (4, 6, 32), dtype=jnp.float32)
    out3 = jax.block_until_ready(taylor_softmax(x3, dim=1, t=2))
    ref3 = taylor_softmax_ref(x3, dim=1, t=2)
    assert jnp.allclose(out3, ref3, atol=1e-5, rtol=1e-4), "mismatch vs reference (case 3)"
    assert jnp.allclose(jnp.sum(out3, axis=1), jnp.ones((4, 32)), atol=1e-4)

    print("KERNEL_OK")
</pallas_src>

<mosaic_0001>
module attributes {stable_mosaic.version = 11 : i64} {
  func.func @_taylor_softmax_kernel(%arg0: i32, %arg1: memref<8x128xf32, #tpu.memory_space<vmem>>, %arg2: memref<8x128xf32, #tpu.memory_space<vmem>>) attributes {dimension_semantics = [#tpu.dimension_semantics<parallel>], iteration_bounds = array<i64: 2>, scalar_prefetch = 0 : i64, scratch_operands = 0 : i64, tpu.core_type = #tpu.core_type<tc>, window_params = [{transform_indices = @transform_0, window_bounds = array<i64: 8, 128>}, {transform_indices = @transform_1, window_bounds = array<i64: 8, 128>}]} {
    %c0 = arith.constant 0 : index
    %c0_0 = arith.constant 0 : index
    %0 = vector.load %arg1[%c0, %c0_0] : memref<8x128xf32, #tpu.memory_space<vmem>>, vector<8x128xf32>
    %cst = arith.constant 5.000000e-01 : f32
    %1 = vector.broadcast %cst : f32 to vector<8x128xf32>
    %2 = arith.mulf %1, %0 : vector<8x128xf32>
    %cst_1 = arith.constant 1.000000e+00 : f32
    %3 = vector.broadcast %cst_1 : f32 to vector<8x128xf32>
    %4 = arith.addf %2, %3 : vector<8x128xf32>
    %5 = arith.mulf %4, %0 : vector<8x128xf32>
    %cst_2 = arith.constant 1.000000e+00 : f32
    %6 = vector.broadcast %cst_2 : f32 to vector<8x128xf32>
    %7 = arith.addf %5, %6 : vector<8x128xf32>
    %cst_3 = arith.constant dense<0.000000e+00> : vector<8xf32>
    %8 = vector.multi_reduction <add>, %7, %cst_3 [1] : vector<8x128xf32> to vector<8xf32>
    %9 = vector.shape_cast %8 : vector<8xf32> to vector<8x1xf32>
    %cst_4 = arith.constant 1.000000e+00 : f32
    %10 = vector.broadcast %cst_4 : f32 to vector<8x1xf32>
    %11 = arith.divf %10, %9 : vector<8x1xf32>
    %12 = vector.broadcast %11 : vector<8x1xf32> to vector<8x128xf32>
    %13 = arith.mulf %7, %12 : vector<8x128xf32>
    %c0_5 = arith.constant 0 : index
    %c0_6 = arith.constant 0 : index
    %14 = vector.load %arg2[%c0_5, %c0_6] : memref<8x128xf32, #tpu.memory_space<vmem>>, vector<8x128xf32>
    tpu.vector_store %arg2[%c0_5, %c0_6], %13 {strides = array<i32>} : memref<8x128xf32, #tpu.memory_space<vmem>>, vector<8x128xf32>,
    return
  }
  func.func @transform_0(%arg0: i32) -> (i32, i32) {
    %c0_i32 = arith.constant 0 : i32
    %c0_i32_0 = arith.constant 0 : i32
    return %arg0, %c0_i32 : i32, i32
  }
  func.func @transform_1(%arg0: i32) -> (i32, i32) {
    %c0_i32 = arith.constant 0 : i32
    %c0_i32_0 = arith.constant 0 : i32
    return %arg0, %c0_i32 : i32, i32
  }
}

</mosaic_0001>

<llo_original>
// kernel: tpu_custom_call.1
$region0: #{tpu_custom_call.1}
  #allocation0 [shape = 'u32[]', space=smem, size = 0x4, offset = 0x4, fixed_abs, tag = 'smem constant byte address 0x4 - core index']
  #allocation1 [shape = 'u32[72,128]{1,0:T(1,128)}', space=vmem, size = 0x9000, scoped, tag = 'internal scratch']
  %s0 = inlined_call_operand.hbm [shape: f32[16,128], index: 0, kind: input, shape index: {}]
  %s1 = inlined_call_operand.hbm [shape: f32[16,128], index: 1, kind: output, shape index: {}]
  %s2 = sld [smem:[#allocation0]]
  $region41: #{tpu_custom_call.1} parent=0
    _
  %s4 = ssub.s32 1, %s2
  %s5 = scalar_select 0, %s4, %s2
  $region1: #{tpu_custom_call.1} parent=0
    #allocation2 [shape = 'u8[8192]{0}', space=vmem, size = 0x2000, scoped, tag = 'input window, operand 0']
    #allocation3 [shape = 's32[2]{0}', space=sflag, size = 0x8, scoped, tag = 'scoped memory for tpu_custom_call.1']
    #allocation4 [shape = 's32[2]{0}', space=sflag, size = 0x8, scoped, tag = 'scoped memory for tpu_custom_call.1']
    #allocation5 [shape = 'u8[8192]{0}', space=vmem, size = 0x2000, scoped, tag = 'output window, operand 0']
    %6 = vsyncpa [#allocation3], 0
    %s7 = scalar_lea.sflag [#allocation3], 1
    %8 = vsyncpa %s7, 0
    %9 = vsyncpa [#allocation4], 0
    %s10 = scalar_lea.sflag [#allocation4], 1
    %11 = vsyncpa %s10, 0
    loop: start=0, step=1, limit=4
    $region2: #{tpu_custom_call.1} parent=1 // loop_pre_header
      _
    $region3: #{tpu_custom_call.1} parent=1 // loop_header
      %s13 = sphi 0, %s17
      %p14 = scmp.ge.s32.totalorder %s13, 4
      %s23 = sphi 0, %s25
      %s26 = sphi 0, %s23
      %s27 = sphi 0, %s26
      %s43 = sphi 0, %s27
      %s49 = sphi 0, %s51
      %s52 = sphi 0, %s49
      %s53 = sphi 0, %s52
      %s69 = sphi 0, %s53
    $region4: #{tpu_custom_call.1} parent=1 // loop_header_branch
      %16 = sbr.rel (%p14) target = $region8
    $region5: #{tpu_custom_call.1} parent=1 // loop_body
      %s18 = ssub.s32 %s13, 1
      %s19 = ssub.s32 %s13, 2
      %s20 = sadd.s32 %s13, 1
      %s21 = ssub.s32 %s13, %s20
      %p22 = scmp.eq.s32.totalorder %s21, 0
      %s24 = sadd.s32 %s23, 1
      %s25 = scalar_select %p22, %s23, %s24
      %p28 = pneg %p22
      %p29 = scmp.eq.s32.totalorder %s13, 1
      %p30 = por %p28, %p29
      %p31 = scmp.ne.s32.totalorder %s23, %s26
      %p32 = scmp.eq.s32.totalorder %s13, 0
      %p33 = por %p31, %p32
      %p34 = scmp.ne.s32.totalorder %s23, %s26
      %p35 = scmp.eq.s32.totalorder %s18, 1
      %p36 = por %p34, %p35
      %p37 = scmp.ne.s32.totalorder %s26, %s27
      %p38 = scmp.eq.s32.totalorder %s18, 0
      %p39 = por %p37, %p38
      %p40 = scmp.ne.s32.totalorder %s26, %s27
      %p41 = scmp.eq.s32.totalorder %s19, 1
      %p42 = por %p40, %p41
      %p44 = scmp.ne.s32.totalorder %s27, %s43
      %p45 = scmp.eq.s32.totalorder %s19, 0
      %p46 = por %p44, %p45
      %s47 = ssub.s32 %s13, %s20
      %p48 = scmp.eq.s32.totalorder %s47, 0
      %s50 = sadd.s32 %s49, 1
      %s51 = scalar_select %p48, %s49, %s50
      %p54 = pneg %p48
      %p55 = scmp.eq.s32.totalorder %s13, 1
      %p56 = por %p54, %p55
      %p57 = scmp.ne.s32.totalorder %s49, %s52
      %p58 = scmp.eq.s32.totalorder %s13, 0
      %p59 = por %p57, %p58
      %p60 = scmp.ne.s32.totalorder %s49, %s52
      %p61 = scmp.eq.s32.totalorder %s18, 1
      %p62 = por %p60, %p61
      %p63 = scmp.ne.s32.totalorder %s52, %s53
      %p64 = scmp.eq.s32.totalorder %s18, 0
      %p65 = por %p63, %p64
      %p66 = scmp.ne.s32.totalorder %s52, %s53
      %p67 = scmp.eq.s32.totalorder %s19, 1
      %p68 = por %p66, %p67
      %p70 = scmp.ne.s32.totalorder %s53, %s69
      %p71 = scmp.eq.s32.totalorder %s19, 0
      %p72 = por %p70, %p71
      %p73 = scmp.le.s32.totalorder 1, %s13
      %p74 = scmp.lt.s32.totalorder %s13, 3
      %p75 = pnand %p73, %p74
      %p76 = pneg %p75
      // Predicated region
      $region9: #{tpu_custom_call.1} parent=5 // pred_check
        _
      $region10: #{tpu_custom_call.1} parent=5 // pred_check_branch
        %78 = sbr.rel (%p75) target = $region12
      $region11: #{tpu_custom_call.1} parent=5 // pred_region
        %s79 = ssub.s32 %s13, 1
      $region12: #{tpu_custom_call.1} parent=5 // pred_fallthru
        _
      %p80 = scmp.lt.s32.totalorder %s13, 2
      // Predicated region
      $region13: #{tpu_custom_call.1} parent=5 // pred_check
        %p81 = pneg %p80
      $region14: #{tpu_custom_call.1} parent=5 // pred_check_branch
        %83 = sbr.rel (%p81) target = $region16
      $region15: #{tpu_custom_call.1} parent=5 // pred_region
        // Predicated region
        $region17: #{tpu_custom_call.1} parent=15 // pred_check
          %p84 = pneg %p33
        $region18: #{tpu_custom_call.1} parent=15 // pred_check_branch
          %86 = sbr.rel (%p84) target = $region20
        $region19: #{tpu_custom_call.1} parent=15 // pred_region
          %s87 = sand.u32 %s23, 1
          %s88 = scalar_lea.sflag [#allocation3], %s87
          %s89 = sand.u32 %s23, 1
          %s90 = smul.addr %s89, 8
          %s91 = scalar_lea.vmem [#allocation2], %s90
          %93 = vsyncadd %s88, 0
          %s94 = smul.addr %s13, 8
          %s95 = scalar_lea.hbm %s0, %s94
          %s97 = sshll.u32 %s95, 4
          %s98 = int_to_ptr.hbm [resolvable:$true] %s97
          %s99 = sshll.u32 %s91, 4
          %s100 = int_to_ptr.vmem [resolvable:$true] %s99
          %102 = dma.hbm_to_vmem [thread:$0]  %s98, 128, %s100, %s88
        $region20: #{tpu_custom_call.1} parent=15 // pred_fallthru
          _
      $region16: #{tpu_custom_call.1} parent=5 // pred_fallthru
        _
      %p103 = scmp.le.s32.totalorder 1, %s13
      %p104 = scmp.lt.s32.totalorder %s13, 3
      %p105 = pnand %p103, %p104
      %p106 = pneg %p105
      // Predicated region
      $region21: #{tpu_custom_call.1} parent=5 // pred_check
        _
      $region22: #{tpu_custom_call.1} parent=5 // pred_check_branch
        %108 = sbr.rel (%p105) target = $region24
      $region23: #{tpu_custom_call.1} parent=5 // pred_region
        %s109 = ssub.s32 %s13, 1
        %s110 = sand.u32 %s26, 1
        %s111 = scalar_lea.sflag [#allocation3], %s110
        %s112 = sand.u32 %s26, 1
        %s113 = smul.addr %s112, 8
        %s114 = scalar_lea.vmem [#allocation2], %s113
        // Predicated region
        $region25: #{tpu_custom_call.1} parent=23 // pred_check
          %p115 = pneg %p39
        $region26: #{tpu_custom_call.1} parent=23 // pred_check_branch
          %117 = sbr.rel (%p115) target = $region28
        $region27: #{tpu_custom_call.1} parent=23 // pred_region
          %119 = dma.done %s111, 128
        $region28: #{tpu_custom_call.1} parent=23 // pred_fallthru
          _
        %s120 = sand.u32 %s26, 1
        %s121 = scalar_lea.sflag [#allocation3], %s120
        %s122 = sand.u32 %s26, 1
        %s123 = smul.addr %s122, 8
        %s124 = scalar_lea.vmem [#allocation2], %s123
        %p125 = pneg %p39
        %p126 = pneg %p36
        %p127 = pneg %p65
        %p128 = pneg %p62
        %s129 = sand.u32 %s52, 1
        %s130 = scalar_lea.sflag [#allocation4], %s129
        %s131 = sand.u32 %s52, 1
        %s132 = smul.addr %s131, 8
        %s133 = scalar_lea.vmem [#allocation5], %s132
        %v134 = vld [vmem:[%s114] sm:$0xff]
        %v135 = vmul.f32 %v134, 0.5
        %v136 = vadd.f32 %v135, 1.0
        %v137 = vmul.f32 %v136, %v134
        %v138 = vadd.f32 %v137, 1.0
        %139 = vadd.xlane.f32.xlu0 %v138
        %v140 = vpop.xlane.xlu0 %139
        %v141 = vrcp.pop %v140
        %v142 = vmul.f32 %v140, %v141
        %v143 = vsub.f32 1.0, %v142
        %v144 = vmul.f32 %v141, %v143
        %v145 = vadd.f32 %v141, %v144
        %vm146 = vweird.f32 %v140
        %vm147 = vweird.f32 %v141
        %vm148 = vmor %vm146, %vm147
        %v149 = vsel %vm148, %v141, %v145
        %v150 = vand.u32 2147483647, %v140
        %vm151 = vcmp.eq.f32.partialorder %v150, 8.507059e+37
        %v152 = vand.u32 %v140, 2147483648
        %v153 = vor.u32 1.1754944e-38, %v152
        %v154 = vsel %vm151, %v153, %v149
        %v155 = vmul.f32 1.0, %v154
        %v156 = vmul.f32 %v138, %v155
        %157 = vst [vmem:[%s133] sm:$0xff] %v156
        %s158 = sand.u32 %s52, 1
        %s159 = scalar_lea.sflag [#allocation4], %s158
        %s160 = sand.u32 %s52, 1
        %s161 = smul.addr %s160, 8
        %s162 = scalar_lea.vmem [#allocation5], %s161
        // Predicated region
        $region29: #{tpu_custom_call.1} parent=23 // pred_check
          %p163 = pneg %p62
        $region30: #{tpu_custom_call.1} parent=23 // pred_check_branch
          %165 = sbr.rel (%p163) target = $region32
        $region31: #{tpu_custom_call.1} parent=23 // pred_region
          %167 = vsyncadd %s159, 0
          %s168 = smul.addr %s18, 8
          %s169 = scalar_lea.hbm %s1, %s168
          %s171 = sshll.u32 %s162, 4
          %s172 = int_to_ptr.vmem [resolvable:$true] %s171
          %s173 = sshll.u32 %s169, 4
          %s174 = int_to_ptr.hbm [resolvable:$true] %s173
          %176 = dma.vmem_to_hbm [thread:$0]  %s172, 128, %s174, %s159
        $region32: #{tpu_custom_call.1} parent=23 // pred_fallthru
          _
      $region24: #{tpu_custom_call.1} parent=5 // pred_fallthru
        _
      %p177 = scmp.le.s32.totalorder 2, %s13
      // Predicated region
      $region33: #{tpu_custom_call.1} parent=5 // pred_check
        %p178 = pneg %p177
      $region34: #{tpu_custom_call.1} parent=5 // pred_check_branch
        %180 = sbr.rel (%p178) target = $region36
      $region35: #{tpu_custom_call.1} parent=5 // pred_region
        %s181 = ssub.s32 %s13, 2
        // Predicated region
        $region37: #{tpu_custom_call.1} parent=35 // pred_check
          %p182 = pneg %p68
        $region38: #{tpu_custom_call.1} parent=35 // pred_check_branch
          %184 = sbr.rel (%p182) target = $region40
        $region39: #{tpu_custom_call.1} parent=35 // pred_region
          %s185 = sand.u32 %s53, 1
          %s186 = scalar_lea.sflag [#allocation4], %s185
          %s187 = sand.u32 %s53, 1
          %s188 = smul.addr %s187, 8
          %s189 = scalar_lea.vmem [#allocation5], %s188
          %191 = dma.done %s186, 128
        $region40: #{tpu_custom_call.1} parent=35 // pred_fallthru
          _
      $region36: #{tpu_custom_call.1} parent=5 // pred_fallthru
        _
    $region6: #{tpu_custom_call.1} parent=1 // loop_footer
      %s17 = sadd.s32 1, %s13
    $region7: #{tpu_custom_call.1} parent=1 // loop_footer_branch
      %12 = sbr.rel target = $region3
    $region8: #{tpu_custom_call.1} parent=1 // loop_exit
      _
    %192 = vsyncpa [#allocation3], 1
    %s193 = scalar_lea.sflag [#allocation3], 1
    %194 = vsyncpa %s193, 1
    %195 = vsyncpa [#allocation4], 1
    %s196 = scalar_lea.sflag [#allocation4], 1
    %197 = vsyncpa %s196, 1

</llo_original>
